<compile_context>
chip_gen: v5e
topology: v5e:2x2
jax: 0.10.0
libtpu: 0.0.40
codegen_flags: <defaults>
</compile_context>

<pallas_src>
import jax
import jax.numpy as jnp
from jax.experimental import pallas as pl
from jax.experimental.pallas import tpu as pltpu


def _round_up(n, m):
    return ((n + m - 1) // m) * m


def _choose_tile(B, block_b):
    """Pick the batch tile.

    Small B: one tile rounded up to 8 sublanes (splitting only adds per-step
    overhead).  Large B: keep >= 4 grid steps so the 'parallel' batch axis can
    shard across v7x's two TensorCores and pipeline, tile a multiple of 256
    (fills the 256-wide MXU row dim on v6e/v7x), and pad waste stays bounded
    instead of up to a full near-empty tail tile.
    """
    if B < 1024:
        return _round_up(B, 8)
    n_tiles = max(4, pl.cdiv(B, block_b))
    return min(block_b, _round_up(pl.cdiv(B, n_tiles), 256))


def mlp_kernel(x_ref, w0_ref, b0_ref, w1_ref, b1_ref,
               w2_ref, b2_ref, w3t_ref, b3_ref, out_ref):
    """One batch tile of the Net3 forward pass.

    Weights/biases use constant index_maps so Pallas keeps them resident in
    VMEM across grid steps; only the x / out tiles are streamed.  Output is a
    lane-dense (1, TB) row.
    """
    mm_dt = w0_ref.dtype                      # matmul input dtype (f32 or bf16)
    x = x_ref[...].astype(mm_dt)              # no-op cast when already mm_dt

    # fc0 -> relu   (Dropout = identity in eval mode)
    h = jnp.dot(x, w0_ref[...], preferred_element_type=jnp.float32) + b0_ref[...]
    h = jnp.maximum(h, 0.0)

    # fc1 -> relu
    h = jnp.dot(h.astype(mm_dt), w1_ref[...],
                preferred_element_type=jnp.float32) + b1_ref[...]
    h = jnp.maximum(h, 0.0)

    # fc2 -> relu
    h = jnp.dot(h.astype(mm_dt), w2_ref[...],
                preferred_element_type=jnp.float32) + b2_ref[...]
    h = jnp.maximum(h, 0.0)                                  # (TB, 64) f32

    # fc3 (64 -> 1) -> relu, computed as (1,64) . (TB,64)^T on the (idle) MXU
    # so the result is already lane-dense (1, TB): unmasked full-lane stores
    # and a dense output DMA instead of 4-bytes-per-row masked vst.msk.
    w3_row = w3t_ref[...].astype(jnp.float32)                # (1, 64), f32
    h3 = jax.lax.dot_general(
        w3_row, h,
        dimension_numbers=(((1,), (1,)), ((), ())),
        preferred_element_type=jnp.float32)                  # (1, TB)
    out_ref[...] = jnp.maximum(h3 + b3_ref[...], 0.0).astype(out_ref.dtype)


def net3_forward(x, params, *, block_b=2048, use_bf16=True):
    """x: (B, n_feature) float32.  params: dict of (in,out) weights / (1,out) biases."""
    B, F = x.shape
    w0, b0 = params["w0"], params["b0"]
    w1, b1 = params["w1"], params["b1"]
    w2, b2 = params["w2"], params["b2"]
    w3, b3 = params["w3"], params["b3"]

    # Lane-dense row view (1, 64) of the (64, 1) final weight for the in-kernel
    # (1,64) x (TB,64)^T matmul.
    w3t = w3.reshape(1, w3.shape[0])

    if use_bf16:
        # bf16 matmul inputs, f32 accumulation (preferred_element_type) and f32
        # bias-add / ReLU epilogue.  Final tiny layer & biases stay f32.
        w0, w1, w2 = (w.astype(jnp.bfloat16) for w in (w0, w1, w2))

    tb = _choose_tile(B, block_b)
    b_pad = _round_up(B, tb)
    if b_pad != B:
        x = jnp.pad(x, ((0, b_pad - B), (0, 0)))
    n_tiles = b_pad // tb

    grid = (n_tiles,)
    const2 = lambda i: (0, 0)

    in_specs = [
        pl.BlockSpec((tb, F), lambda i: (i, 0)),   # x: streamed per batch tile
        pl.BlockSpec(w0.shape, const2),            # weights/biases: resident
        pl.BlockSpec(b0.shape, const2),
        pl.BlockSpec(w1.shape, const2),
        pl.BlockSpec(b1.shape, const2),
        pl.BlockSpec(w2.shape, const2),
        pl.BlockSpec(b2.shape, const2),
        pl.BlockSpec(w3t.shape, const2),
        pl.BlockSpec(b3.shape, const2),
    ]
    # Lane-dense output: one (1, TB) row per grid step.
    out_specs = pl.BlockSpec((1, tb), lambda i: (i, 0))

    flops = 2 * b_pad * (F * 128 + 128 * 128 + 128 * 64 + 64 * 1)
    bytes_accessed = (
        x.size * x.dtype.itemsize + b_pad * 4
        + sum(a.size * a.dtype.itemsize
              for a in (w0, b0, w1, b1, w2, b2, w3t, b3)))

    out = pl.pallas_call(
        mlp_kernel,
        out_shape=jax.ShapeDtypeStruct((n_tiles, tb), jnp.float32),
        grid=grid,
        in_specs=in_specs,
        out_specs=out_specs,
        compiler_params=pltpu.CompilerParams(
            # batch tiles are independent -> lets v7x shard over its 2 TCs
            dimension_semantics=("parallel",)),
        cost_estimate=pl.CostEstimate(
            flops=flops, transcendentals=0, bytes_accessed=bytes_accessed),
    )(x, w0, b0, w1, b1, w2, b2, w3t, b3)

    out = out.reshape(b_pad, 1)                # row-major: tile i -> rows [i*tb, (i+1)*tb)
    return out[:B] if b_pad != B else out


def init_params(key, n_feature):
    """Deterministic init matching PyTorch nn.Linear shapes.
    Weights stored transposed: (in_features, out_features); biases (1, out)."""
    dims = [(n_feature, 128), (128, 128), (128, 64), (64, 1)]
    params = {}
    for i, (fan_in, fan_out) in enumerate(dims):
        key, kw, kb = jax.random.split(key, 3)
        bound = 1.0 / jnp.sqrt(fan_in)
        params[f"w{i}"] = jax.random.uniform(
            kw, (fan_in, fan_out), jnp.float32, -bound, bound)
        params[f"b{i}"] = jax.random.uniform(
            kb, (1, fan_out), jnp.float32, -bound, bound)
    return params


def reference_forward(x, params):
    h = jnp.maximum(x @ params["w0"] + params["b0"], 0.0)
    h = jnp.maximum(h @ params["w1"] + params["b1"], 0.0)
    h = jnp.maximum(h @ params["w2"] + params["b2"], 0.0)
    h = jnp.maximum(h @ params["w3"] + params["b3"], 0.0)
    return h


if __name__ == "__main__":
    key = jax.random.PRNGKey(0)
    n_feature = 32
    batch = 8

    key, kx = jax.random.split(key)
    x = jax.random.normal(kx, (batch, n_feature), jnp.float32)
    params = init_params(key, n_feature)

    ref = reference_forward(x, params)

    # Default path (bf16 MXU inputs, f32 accumulation + f32 epilogue).
    out = jax.block_until_ready(net3_forward(x, params))
    assert out.shape == (batch, 1), out.shape
    assert jnp.allclose(out, ref, atol=1e-1, rtol=1e-1), (
        "bf16-default mismatch vs reference: max abs diff "
        f"{jnp.max(jnp.abs(out - ref))}")

    # Strict f32 path (bit-level semantics of the module in eval mode).
    out_f32 = jax.block_until_ready(net3_forward(x, params, use_bf16=False))
    assert jnp.allclose(out_f32, ref, atol=1e-4, rtol=1e-4), (
        "f32 mismatch vs reference: max abs diff "
        f"{jnp.max(jnp.abs(out_f32 - ref))}")

    # Ragged small batch (exercises the pad-to-tile path + lane-dense reshape).
    x2 = jax.random.normal(jax.random.PRNGKey(1), (11, n_feature), jnp.float32)
    out2 = jax.block_until_ready(net3_forward(x2, params, use_bf16=False))
    ref2 = reference_forward(x2, params)
    assert out2.shape == (11, 1), out2.shape
    assert jnp.allclose(out2, ref2, atol=1e-4, rtol=1e-4), (
        "ragged-batch mismatch vs reference: max abs diff "
        f"{jnp.max(jnp.abs(out2 - ref2))}")

    # Multi-tile batch (exercises >1 grid steps, tile capping and the
    # cross-tile output reordering of the lane-dense layout), strict f32.
    x3 = jax.random.normal(jax.random.PRNGKey(2), (1300, n_feature), jnp.float32)
    out3 = jax.block_until_ready(net3_forward(x3, params, use_bf16=False))
    ref3 = reference_forward(x3, params)
    assert out3.shape == (1300, 1), out3.shape
    assert jnp.allclose(out3, ref3, atol=1e-4, rtol=1e-4), (
        "multi-tile mismatch vs reference: max abs diff "
        f"{jnp.max(jnp.abs(out3 - ref3))}")

    print("KERNEL_OK")
</pallas_src>

<mosaic_0001>
module attributes {stable_mosaic.version = 11 : i64} {
  func.func @mlp_kernel(%arg0: i32, %arg1: memref<8x32xf32, #tpu.memory_space<vmem>>, %arg2: memref<32x128xbf16, #tpu.memory_space<vmem>>, %arg3: memref<1x128xf32, #tpu.memory_space<vmem>>, %arg4: memref<128x128xbf16, #tpu.memory_space<vmem>>, %arg5: memref<1x128xf32, #tpu.memory_space<vmem>>, %arg6: memref<128x64xbf16, #tpu.memory_space<vmem>>, %arg7: memref<1x64xf32, #tpu.memory_space<vmem>>, %arg8: memref<1x64xf32, #tpu.memory_space<vmem>>, %arg9: memref<1x1xf32, #tpu.memory_space<vmem>>, %arg10: memref<1x8xf32, #tpu.memory_space<vmem>>) attributes {dimension_semantics = [#tpu.dimension_semantics<parallel>], iteration_bounds = array<i64: 1>, scalar_prefetch = 0 : i64, scratch_operands = 0 : i64, tpu.core_type = #tpu.core_type<tc>, window_params = [{transform_indices = @transform_0, window_bounds = array<i64: 8, 32>}, {pipeline_mode = #tpu.pipeline_mode<synchronous>, transform_indices = @transform_1, window_bounds = array<i64: 32, 128>}, {pipeline_mode = #tpu.pipeline_mode<synchronous>, transform_indices = @transform_2, window_bounds = array<i64: 1, 128>}, {pipeline_mode = #tpu.pipeline_mode<synchronous>, transform_indices = @transform_3, window_bounds = array<i64: 128, 128>}, {pipeline_mode = #tpu.pipeline_mode<synchronous>, transform_indices = @transform_4, window_bounds = array<i64: 1, 128>}, {pipeline_mode = #tpu.pipeline_mode<synchronous>, transform_indices = @transform_5, window_bounds = array<i64: 128, 64>}, {pipeline_mode = #tpu.pipeline_mode<synchronous>, transform_indices = @transform_6, window_bounds = array<i64: 1, 64>}, {pipeline_mode = #tpu.pipeline_mode<synchronous>, transform_indices = @transform_7, window_bounds = array<i64: 1, 64>}, {pipeline_mode = #tpu.pipeline_mode<synchronous>, transform_indices = @transform_8, window_bounds = array<i64: 1, 1>}, {transform_indices = @transform_9, window_bounds = array<i64: 1, 8>}]} {
    %c0 = arith.constant 0 : index
    %c0_0 = arith.constant 0 : index
    %0 = vector.load %arg1[%c0, %c0_0] : memref<8x32xf32, #tpu.memory_space<vmem>>, vector<8x32xf32>
    %1 = arith.truncf %0 : vector<8x32xf32> to vector<8x32xbf16>
    %c0_1 = arith.constant 0 : index
    %c0_2 = arith.constant 0 : index
    %2 = vector.load %arg2[%c0_1, %c0_2] : memref<32x128xbf16, #tpu.memory_space<vmem>>, vector<32x128xbf16>
    %cst = arith.constant dense<0.000000e+00> : vector<8x128xf32>
    %3 = tpu.matmul %1, %2, %cst {dimension_numbers = #tpu.dot_dimension_numbers<[1], [0], [0], [1], [0, 0, 1, 1], [], []>} : vector<8x32xbf16>, vector<32x128xbf16>, vector<8x128xf32> -> vector<8x128xf32>
    %c0_3 = arith.constant 0 : index
    %c0_4 = arith.constant 0 : index
    %4 = vector.load %arg3[%c0_3, %c0_4] : memref<1x128xf32, #tpu.memory_space<vmem>>, vector<1x128xf32>
    %5 = vector.broadcast %4 : vector<1x128xf32> to vector<8x128xf32>
    %6 = arith.addf %3, %5 : vector<8x128xf32>
    %cst_5 = arith.constant 0.000000e+00 : f32
    %7 = vector.broadcast %cst_5 : f32 to vector<8x128xf32>
    %8 = arith.maximumf %6, %7 : vector<8x128xf32>
    %9 = arith.truncf %8 : vector<8x128xf32> to vector<8x128xbf16>
    %c0_6 = arith.constant 0 : index
    %c0_7 = arith.constant 0 : index
    %10 = vector.load %arg4[%c0_6, %c0_7] : memref<128x128xbf16, #tpu.memory_space<vmem>>, vector<128x128xbf16>
    %cst_8 = arith.constant dense<0.000000e+00> : vector<8x128xf32>
    %11 = tpu.matmul %9, %10, %cst_8 {dimension_numbers = #tpu.dot_dimension_numbers<[1], [0], [0], [1], [0, 0, 1, 1], [], []>} : vector<8x128xbf16>, vector<128x128xbf16>, vector<8x128xf32> -> vector<8x128xf32>
    %c0_9 = arith.constant 0 : index
    %c0_10 = arith.constant 0 : index
    %12 = vector.load %arg5[%c0_9, %c0_10] : memref<1x128xf32, #tpu.memory_space<vmem>>, vector<1x128xf32>
    %13 = vector.broadcast %12 : vector<1x128xf32> to vector<8x128xf32>
    %14 = arith.addf %11, %13 : vector<8x128xf32>
    %cst_11 = arith.constant 0.000000e+00 : f32
    %15 = vector.broadcast %cst_11 : f32 to vector<8x128xf32>
    %16 = arith.maximumf %14, %15 : vector<8x128xf32>
    %17 = arith.truncf %16 : vector<8x128xf32> to vector<8x128xbf16>
    %c0_12 = arith.constant 0 : index
    %c0_13 = arith.constant 0 : index
    %18 = vector.load %arg6[%c0_12, %c0_13] : memref<128x64xbf16, #tpu.memory_space<vmem>>, vector<128x64xbf16>
    %cst_14 = arith.constant dense<0.000000e+00> : vector<8x64xf32>
    %19 = tpu.matmul %17, %18, %cst_14 {dimension_numbers = #tpu.dot_dimension_numbers<[1], [0], [0], [1], [0, 0, 1, 1], [], []>} : vector<8x128xbf16>, vector<128x64xbf16>, vector<8x64xf32> -> vector<8x64xf32>
    %c0_15 = arith.constant 0 : index
    %c0_16 = arith.constant 0 : index
    %20 = vector.load %arg7[%c0_15, %c0_16] : memref<1x64xf32, #tpu.memory_space<vmem>>, vector<1x64xf32>
    %21 = vector.broadcast %20 : vector<1x64xf32> to vector<8x64xf32>
    %22 = arith.addf %19, %21 : vector<8x64xf32>
    %cst_17 = arith.constant 0.000000e+00 : f32
    %23 = vector.broadcast %cst_17 : f32 to vector<8x64xf32>
    %24 = arith.maximumf %22, %23 : vector<8x64xf32>
    %c0_18 = arith.constant 0 : index
    %c0_19 = arith.constant 0 : index
    %25 = vector.load %arg8[%c0_18, %c0_19] : memref<1x64xf32, #tpu.memory_space<vmem>>, vector<1x64xf32>
    %cst_20 = arith.constant dense<0.000000e+00> : vector<1x8xf32>
    %26 = tpu.matmul %25, %24, %cst_20 {dimension_numbers = #tpu.dot_dimension_numbers<[1], [1], [0], [0], [0, 0, 1, 0], [], []>} : vector<1x64xf32>, vector<8x64xf32>, vector<1x8xf32> -> vector<1x8xf32>
    %c0_21 = arith.constant 0 : index
    %c0_22 = arith.constant 0 : index
    %27 = vector.load %arg9[%c0_21, %c0_22] : memref<1x1xf32, #tpu.memory_space<vmem>>, vector<1x1xf32>
    %28 = vector.broadcast %27 : vector<1x1xf32> to vector<1x8xf32>
    %29 = arith.addf %26, %28 : vector<1x8xf32>
    %cst_23 = arith.constant 0.000000e+00 : f32
    %30 = vector.broadcast %cst_23 : f32 to vector<1x8xf32>
    %31 = arith.maximumf %29, %30 : vector<1x8xf32>
    %c0_24 = arith.constant 0 : index
    %c0_25 = arith.constant 0 : index
    %32 = vector.load %arg10[%c0_24, %c0_25] : memref<1x8xf32, #tpu.memory_space<vmem>>, vector<1x8xf32>
    tpu.vector_store %arg10[%c0_24, %c0_25], %31 {strides = array<i32>} : memref<1x8xf32, #tpu.memory_space<vmem>>, vector<1x8xf32>,
    return
  }
  func.func @transform_0(%arg0: i32) -> (i32, i32) {
    %c0_i32 = arith.constant 0 : i32
    %c0_i32_0 = arith.constant 0 : i32
    return %arg0, %c0_i32 : i32, i32
  }
  func.func @transform_1(%arg0: i32) -> (i32, i32) {
    %c0_i32 = arith.constant 0 : i32
    %c0_i32_0 = arith.constant 0 : i32
    %c0_i32_1 = arith.constant 0 : i32
    return %c0_i32, %c0_i32_0 : i32, i32
  }
  func.func @transform_2(%arg0: i32) -> (i32, i32) {
    %c0_i32 = arith.constant 0 : i32
    %c0_i32_0 = arith.constant 0 : i32
    %c0_i32_1 = arith.constant 0 : i32
    return %c0_i32, %c0_i32_0 : i32, i32
  }
  func.func @transform_3(%arg0: i32) -> (i32, i32) {
    %c0_i32 = arith.constant 0 : i32
    %c0_i32_0 = arith.constant 0 : i32
    %c0_i32_1 = arith.constant 0 : i32
    return %c0_i32, %c0_i32_0 : i32, i32
  }
  func.func @transform_4(%arg0: i32) -> (i32, i32) {
    %c0_i32 = arith.constant 0 : i32
    %c0_i32_0 = arith.constant 0 : i32
    %c0_i32_1 = arith.constant 0 : i32
    return %c0_i32, %c0_i32_0 : i32, i32
  }
  func.func @transform_5(%arg0: i32) -> (i32, i32) {
    %c0_i32 = arith.constant 0 : i32
    %c0_i32_0 = arith.constant 0 : i32
    %c0_i32_1 = arith.constant 0 : i32
    return %c0_i32, %c0_i32_0 : i32, i32
  }
  func.func @transform_6(%arg0: i32) -> (i32, i32) {
    %c0_i32 = arith.constant 0 : i32
    %c0_i32_0 = arith.constant 0 : i32
    %c0_i32_1 = arith.constant 0 : i32
    return %c0_i32, %c0_i32_0 : i32, i32
  }
  func.func @transform_7(%arg0: i32) -> (i32, i32) {
    %c0_i32 = arith.constant 0 : i32
    %c0_i32_0 = arith.constant 0 : i32
    %c0_i32_1 = arith.constant 0 : i32
    return %c0_i32, %c0_i32_0 : i32, i32
  }
  func.func @transform_8(%arg0: i32) -> (i32, i32) {
    %c0_i32 = arith.constant 0 : i32
    %c0_i32_0 = arith.constant 0 : i32
    %c0_i32_1 = arith.constant 0 : i32
    return %c0_i32, %c0_i32_0 : i32, i32
  }
  func.func @transform_9(%arg0: i32) -> (i32, i32) {
    %c0_i32 = arith.constant 0 : i32
    %c0_i32_0 = arith.constant 0 : i32
    return %arg0, %c0_i32 : i32, i32
  }
}

</mosaic_0001>

<llo_original>
// kernel: tpu_custom_call.1
$region0: #{tpu_custom_call.1}
  #allocation0 [shape = 'u32[]', space=smem, size = 0x4, offset = 0x4, fixed_abs, tag = 'smem constant byte address 0x4 - core index']
  #allocation1 [shape = 'u32[72,128]{1,0:T(1,128)}', space=vmem, size = 0x9000, scoped, tag = 'internal scratch']
  #allocation2 [shape = 'f32[1,1]{1,0:T(1,128)S(1)}', space=vmem, size = 0x200, scoped, tag = 'scoped memory for tpu_custom_call.1']
  %s0 = inlined_call_operand.vmem [shape: f32[8,32], index: 0, kind: input, shape index: {}]
  %s1 = inlined_call_operand.vmem [shape: bf16[32,128], index: 1, kind: input, shape index: {}]
  %s2 = inlined_call_operand.vmem [shape: f32[1,128], index: 2, kind: input, shape index: {}]
  %s3 = inlined_call_operand.vmem [shape: bf16[128,128], index: 3, kind: input, shape index: {}]
  %s4 = inlined_call_operand.vmem [shape: f32[1,128], index: 4, kind: input, shape index: {}]
  %s5 = inlined_call_operand.vmem [shape: bf16[128,64], index: 5, kind: input, shape index: {}]
  %s6 = inlined_call_operand.vmem [shape: f32[1,64], index: 6, kind: input, shape index: {}]
  %s7 = inlined_call_operand.vmem [shape: f32[1,64], index: 7, kind: input, shape index: {}]
  %s8 = inlined_call_operand.<no memory space> [shape: f32[1,1], index: 8, kind: input, shape index: {}]
  %s9 = inlined_call_operand.hbm [shape: f32[1,8], index: 9, kind: output, shape index: {}]
  %s10 = sld [smem:[#allocation0]]
  $region46: #{tpu_custom_call.1} parent=0
    _
  %s12 = ssub.s32 1, %s10
  %s13 = scalar_select 0, %s12, %s10
  %v14 = vstv %s8
  %15 = vst [vmem:[#allocation2] sm:$0x1] %v14
  $region1: #{tpu_custom_call.1} parent=0
    #allocation3 [shape = 'u8[512]{0}', space=vmem, size = 0x400, scoped, tag = 'output window, operand 0, single buffered']
    #allocation4 [shape = 's32[1]{0}', space=sflag, size = 0x4, scoped, tag = 'scoped memory for tpu_custom_call.1']
    %16 = vsyncpa [#allocation4], 0
    // Predicated region
    $region2: #{tpu_custom_call.1} parent=1 // pred_check
      _
    $region3: #{tpu_custom_call.1} parent=1 // pred_check_branch
      %18 = sbr.rel (0) target = $region5
    $region4: #{tpu_custom_call.1} parent=1 // pred_region
      _
    $region5: #{tpu_custom_call.1} parent=1 // pred_fallthru
      _
    // Predicated region
    $region6: #{tpu_custom_call.1} parent=1 // pred_check
      _
    $region7: #{tpu_custom_call.1} parent=1 // pred_check_branch
      %20 = sbr.rel (0) target = $region9
    $region8: #{tpu_custom_call.1} parent=1 // pred_region
      _
    $region9: #{tpu_custom_call.1} parent=1 // pred_fallthru
      _
    // Predicated region
    $region10: #{tpu_custom_call.1} parent=1 // pred_check
      _
    $region11: #{tpu_custom_call.1} parent=1 // pred_check_branch
      %22 = sbr.rel (0) target = $region13
    $region12: #{tpu_custom_call.1} parent=1 // pred_region
      _
    $region13: #{tpu_custom_call.1} parent=1 // pred_fallthru
      _
    // Predicated region
    $region14: #{tpu_custom_call.1} parent=1 // pred_check
      _
    $region15: #{tpu_custom_call.1} parent=1 // pred_check_branch
      %24 = sbr.rel (0) target = $region17
    $region16: #{tpu_custom_call.1} parent=1 // pred_region
      _
    $region17: #{tpu_custom_call.1} parent=1 // pred_fallthru
      _
    // Predicated region
    $region18: #{tpu_custom_call.1} parent=1 // pred_check
      _
    $region19: #{tpu_custom_call.1} parent=1 // pred_check_branch
      %26 = sbr.rel (0) target = $region21
    $region20: #{tpu_custom_call.1} parent=1 // pred_region
      _
    $region21: #{tpu_custom_call.1} parent=1 // pred_fallthru
      _
    // Predicated region
    $region22: #{tpu_custom_call.1} parent=1 // pred_check
      _
    $region23: #{tpu_custom_call.1} parent=1 // pred_check_branch
      %28 = sbr.rel (0) target = $region25
    $region24: #{tpu_custom_call.1} parent=1 // pred_region
      _
    $region25: #{tpu_custom_call.1} parent=1 // pred_fallthru
      _
    // Predicated region
    $region26: #{tpu_custom_call.1} parent=1 // pred_check
      _
    $region27: #{tpu_custom_call.1} parent=1 // pred_check_branch
      %30 = sbr.rel (0) target = $region29
    $region28: #{tpu_custom_call.1} parent=1 // pred_region
      _
    $region29: #{tpu_custom_call.1} parent=1 // pred_fallthru
      _
    // Predicated region
    $region30: #{tpu_custom_call.1} parent=1 // pred_check
      _
    $region31: #{tpu_custom_call.1} parent=1 // pred_check_branch
      %32 = sbr.rel (0) target = $region33
    $region32: #{tpu_custom_call.1} parent=1 // pred_region
      _
    $region33: #{tpu_custom_call.1} parent=1 // pred_fallthru
      _
    // Predicated region
    $region34: #{tpu_custom_call.1} parent=1 // pred_check
      _
    $region35: #{tpu_custom_call.1} parent=1 // pred_check_branch
      %34 = sbr.rel (0) target = $region37
    $region36: #{tpu_custom_call.1} parent=1 // pred_region
      _
    $region37: #{tpu_custom_call.1} parent=1 // pred_fallthru
      _
    %v36 = vld [vmem:[%s0] sm:$0xff]
    %v37 = vpack.c.bf16 %v36, %v36
    %v38 = vld [vmem:[%s1] sm:$0xf]
    %v39 = vld [vmem:[%s1 + $0x4] sm:$0xf]
    %v40 = vld [vmem:[%s1 + $0x8] sm:$0xf]
    %v41 = vld [vmem:[%s1 + $0xc] sm:$0xf]
    %v42 = vld [vmem:[%s2] sm:$0x1]
    %v44 = vperm.slane %v42, 0
    %v50 = vunpack.c.l.b16 %v38
    %v51 = vunpack.c.l.b16 %v39
    %v52 = vunpack.c.l.b16 %v40
    %v53 = vunpack.c.l.b16 %v41
    %v54 = vpack.c.b16 %v51, %v50
    %v55 = vpack.c.b16 %v53, %v52
    %vm58 = vcmask 261120
    %v60 = vsel %vm58, %v37, 0
    %62 = vmatpush.bf16.msra.mxu0 0
    %63 = vmatpush.bf16.msra.mxu0 0
    %64 = vmatpush.bf16.msra.mxu0 0
    %65 = vmatpush.bf16.msra.mxu0 0
    %66 = vmatpush.bf16.msra.mxu0 0
    %67 = vmatpush.bf16.msra.mxu0 0
    %68 = vmatpush.bf16.msra.mxu0 %v55
    %69 = vmatpush.bf16.msra.mxu0 %v54
    %70 = vmatmul.bf16.gmra.mxu0 %v60
    %v71 = vpop.f32.mrf.mxu0
    %v72 = vadd.f32 %v44, %v71
    %v73 = vpop.f32.mrf.mxu0
    %74 = vdwg.mxu0
    %v75 = vmax.f32 %v72, 0.0
    %v76 = vpack.c.bf16 %v75, %v75
    %v77 = vld [vmem:[%s3] sm:$0xf]
    %v78 = vld [vmem:[%s3 + $0x4] sm:$0xf]
    %v79 = vld [vmem:[%s3 + $0x8] sm:$0xf]
    %v80 = vld [vmem:[%s3 + $0xc] sm:$0xf]
    %v81 = vld [vmem:[%s3 + $0x10] sm:$0xf]
    %v82 = vld [vmem:[%s3 + $0x14] sm:$0xf]
    %v83 = vld [vmem:[%s3 + $0x18] sm:$0xf]
    %v84 = vld [vmem:[%s3 + $0x1c] sm:$0xf]
    %v85 = vld [vmem:[%s3 + $0x20] sm:$0xf]
    %v86 = vld [vmem:[%s3 + $0x24] sm:$0xf]
    %v87 = vld [vmem:[%s3 + $0x28] sm:$0xf]
    %v88 = vld [vmem:[%s3 + $0x2c] sm:$0xf]
    %v89 = vld [vmem:[%s3 + $0x30] sm:$0xf]
    %v90 = vld [vmem:[%s3 + $0x34] sm:$0xf]
    %v91 = vld [vmem:[%s3 + $0x38] sm:$0xf]
    %v92 = vld [vmem:[%s3 + $0x3c] sm:$0xf]
    %v93 = vld [vmem:[%s4] sm:$0x1]
    %v95 = vperm.slane %v93, 0
    %v113 = vunpack.c.l.b16 %v77
    %v114 = vunpack.c.l.b16 %v78
    %v115 = vunpack.c.l.b16 %v79
    %v116 = vunpack.c.l.b16 %v80
    %v117 = vunpack.c.l.b16 %v81
    %v118 = vunpack.c.l.b16 %v82
    %v119 = vunpack.c.l.b16 %v83
    %v120 = vunpack.c.l.b16 %v84
    %v121 = vunpack.c.l.b16 %v85
    %v122 = vunpack.c.l.b16 %v86
    %v123 = vunpack.c.l.b16 %v87
    %v124 = vunpack.c.l.b16 %v88
    %v125 = vunpack.c.l.b16 %v89
    %v126 = vunpack.c.l.b16 %v90
    %v127 = vunpack.c.l.b16 %v91
    %v128 = vunpack.c.l.b16 %v92
    %v129 = vpack.c.b16 %v114, %v113
    %v130 = vpack.c.b16 %v116, %v115
    %v131 = vpack.c.b16 %v118, %v117
    %v132 = vpack.c.b16 %v120, %v119
    %v133 = vpack.c.b16 %v122, %v121
    %v134 = vpack.c.b16 %v124, %v123
    %v135 = vpack.c.b16 %v126, %v125
    %v136 = vpack.c.b16 %v128, %v127
    %145 = vmatpush.bf16.msra.mxu0 %v136
    %146 = vmatpush.bf16.msra.mxu0 %v135
    %147 = vmatpush.bf16.msra.mxu0 %v134
    %148 = vmatpush.bf16.msra.mxu0 %v133
    %149 = vmatpush.bf16.msra.mxu0 %v132
    %150 = vmatpush.bf16.msra.mxu0 %v131
    %151 = vmatpush.bf16.msra.mxu0 %v130
    %152 = vmatpush.bf16.msra.mxu0 %v129
    %153 = vmatmul.bf16.gmra.mxu0 %v76
    %v154 = vpop.f32.mrf.mxu0
    %v155 = vadd.f32 %v95, %v154
    %v156 = vpop.f32.mrf.mxu0
    %157 = vdwg.mxu0
    %v158 = vmax.f32 %v155, 0.0
    %v159 = vpack.c.bf16 %v158, %v158
    %v160 = vld [vmem:[%s5] sm:$0xf]
    %v161 = vld [vmem:[%s5 + $0x4] sm:$0xf]
    %v162 = vld [vmem:[%s5 + $0x8] sm:$0xf]
    %v163 = vld [vmem:[%s5 + $0xc] sm:$0xf]
    %v164 = vld [vmem:[%s5 + $0x10] sm:$0xf]
    %v165 = vld [vmem:[%s5 + $0x14] sm:$0xf]
    %v166 = vld [vmem:[%s5 + $0x18] sm:$0xf]
    %v167 = vld [vmem:[%s5 + $0x1c] sm:$0xf]
    %v168 = vld [vmem:[%s5 + $0x20] sm:$0xf]
    %v169 = vld [vmem:[%s5 + $0x24] sm:$0xf]
    %v170 = vld [vmem:[%s5 + $0x28] sm:$0xf]
    %v171 = vld [vmem:[%s5 + $0x2c] sm:$0xf]
    %v172 = vld [vmem:[%s5 + $0x30] sm:$0xf]
    %v173 = vld [vmem:[%s5 + $0x34] sm:$0xf]
    %v174 = vld [vmem:[%s5 + $0x38] sm:$0xf]
    %v175 = vld [vmem:[%s5 + $0x3c] sm:$0xf]
    %v176 = vld [vmem:[%s6] sm:$0x1]
    %v178 = vperm.slane %v176, 0
    %v196 = vunpack.c.l.b16 %v160
    %v197 = vunpack.c.l.b16 %v161
    %v198 = vunpack.c.l.b16 %v162
    %v199 = vunpack.c.l.b16 %v163
    %v200 = vunpack.c.l.b16 %v164
    %v201 = vunpack.c.l.b16 %v165
    %v202 = vunpack.c.l.b16 %v166
    %v203 = vunpack.c.l.b16 %v167
    %v204 = vunpack.c.l.b16 %v168
    %v205 = vunpack.c.l.b16 %v169
    %v206 = vunpack.c.l.b16 %v170
    %v207 = vunpack.c.l.b16 %v171
    %v208 = vunpack.c.l.b16 %v172
    %v209 = vunpack.c.l.b16 %v173
    %v210 = vunpack.c.l.b16 %v174
    %v211 = vunpack.c.l.b16 %v175
    %v212 = vpack.c.b16 %v197, %v196
    %v213 = vpack.c.b16 %v199, %v198
    %v214 = vpack.c.b16 %v201, %v200
    %v215 = vpack.c.b16 %v203, %v202
    %v216 = vpack.c.b16 %v205, %v204
    %v217 = vpack.c.b16 %v207, %v206
    %v218 = vpack.c.b16 %v209, %v208
    %v219 = vpack.c.b16 %v211, %v210
    %228 = vmatpush.bf16.msra.mxu0 %v219
    %229 = vmatpush.bf16.msra.mxu0 %v218
    %230 = vmatpush.bf16.msra.mxu0 %v217
    %231 = vmatpush.bf16.msra.mxu0 %v216
    %232 = vmatpush.bf16.msra.mxu0 %v215
    %233 = vmatpush.bf16.msra.mxu0 %v214
    %234 = vmatpush.bf16.msra.mxu0 %v213
    %235 = vmatpush.bf16.msra.mxu0 %v212
    %236 = vmatmul.bf16.gmra.mxu0 %v159
    %v237 = vpop.f32.mrf.mxu0
    %v238 = vadd.f32 %v178, %v237
    %v239 = vpop.f32.mrf.mxu0
    %240 = vdwg.mxu0
    %v241 = vmax.f32 %v238, 0.0
    %v242 = vld [vmem:[%s7] sm:$0x1]
    %v243 = vld [vmem:[#allocation2] sm:$0x1]
    %245 = vset.pattern.permute.xlu0 0
    %246 = vperm.xlu0 %245, %v243
    %v247 = vpop.permute.xlu0 %246
    %v249 = vperm.slane %v247, 0
    %vm250 = vcmask 523264
    %v252 = vsel %vm250, %v242, 0
    %v255 = vsel %vm250, %v241, 0
    %257 = vmatpush.xpose.msra.mxu0 0.0
    %258 = vmatpush.xpose.msra.mxu0 0.0
    %259 = vmatpush.xpose.msra.mxu0 0.0
    %260 = vmatpush.xpose.msra.mxu0 0.0
    %261 = vmatpush.xpose.msra.mxu0 0.0
    %262 = vmatpush.xpose.msra.mxu0 0.0
    %263 = vmatpush.xpose.msra.mxu0 0.0
    %264 = vmatpush.xpose.msra.mxu0 0.0
    %265 = vmatpush.xpose.msra.mxu0 0.0
    %266 = vmatpush.xpose.msra.mxu0 0.0
    %267 = vmatpush.xpose.msra.mxu0 0.0
    %268 = vmatpush.xpose.msra.mxu0 0.0
    %269 = vmatpush.xpose.msra.mxu0 0.0
    %270 = vmatpush.xpose.msra.mxu0 0.0
    %271 = vmatpush.xpose.msra.mxu0 0.0
    %272 = vmatpush.xpose.msra.mxu0 %v255
    %273 = vmatmul.f32.gmra.mxu0 %v252
    %v274 = vpop.f32.mrf.mxu0
    %v275 = vadd.f32 %v249, %v274
    %276 = vdwg.mxu0
    %v277 = vmax.f32 %v275, 0.0
    %vm278 = vcmask 57344
    %279 = vst.msk [vmem:[#allocation3] sm:$0x1] %vm278, %v277
    // Predicated region
    $region38: #{tpu_custom_call.1} parent=1 // pred_check
      _
    $region39: #{tpu_custom_call.1} parent=1 // pred_check_branch
      %281 = sbr.rel (0) target = $region41
    $region40: #{tpu_custom_call.1} parent=1 // pred_region
      %283 = vsyncadd [#allocation4], 0
      %s285 = sshll.u32 [#allocation3], 4
      %s286 = int_to_ptr.vmem [resolvable:$true] %s285
      %s287 = sshll.u32 %s9, 4
      %s288 = int_to_ptr.hbm [resolvable:$true] %s287
      %290 = dma.vmem_to_hbm [thread:$0]  %s286, 16, %s288, [#allocation4]
    $region41: #{tpu_custom_call.1} parent=1 // pred_fallthru
      _
    // Predicated region
    $region42: #{tpu_custom_call.1} parent=1 // pred_check
      _
    $region43: #{tpu_custom_call.1} parent=1 // pred_check_branch
      %292 = sbr.rel (0) target = $region45
    $region44: #{tpu_custom_call.1} parent=1 // pred_region
      %294 = dma.done [#allocation4], 16
    $region45: #{tpu_custom_call.1} parent=1 // pred_fallthru
      _
    %295 = vsyncpa [#allocation4], 1

</llo_original>
